<compile_context>
chip_gen: v6e
topology: v6e:2x2x1
jax: 0.10.0
libtpu: 0.0.40
codegen_flags: <defaults>
</compile_context>

<pallas_src>
import functools

import jax
import jax.numpy as jnp
from jax.experimental import pallas as pl
from jax.experimental.pallas import tpu as pltpu

FEAT = 2      # in/out feature dim of every Linear
_LANE = 128


def _sdf_kernel(p_ref, x_ref, o_ref, *, n_layers):
    # p_ref: (R, 128) f32 per-lane coefficient table (VMEM, resident):
    #        rows 3l..3l+2 : trunk layer l  [1 + w_self, w_other, bias]
    #        rows 3L..3L+3 : output layer   [c_self, c_other, b1 - b0, dmask]
    #        (even lanes hold the feature-0 value, odd lanes the feature-1 value)
    # x_ref: (tm, 128) f32, lanes are interleaved (x0, x1) sample pairs.
    # o_ref: (tm, 128) f32, log-softmax outputs in the same interleaved layout.
    x = x_ref[...]

    lane = jax.lax.broadcasted_iota(jnp.int32, (1, _LANE), 1)
    is_even = (lane % 2) == 0
    partner = lane + jnp.where(is_even, 1, -1)           # index of the pair partner
    # One-time probe so the pair swap is independent of pltpu.roll's direction
    # convention: take the roll-by-127 result wherever it lands the partner lane,
    # the roll-by-1 result elsewhere.  (Pairs never straddle the 128-lane wrap
    # because 128 is even, so the wrapped lanes are never selected.)
    take_a = pltpu.roll(lane, 127, axis=1) == partner     # (1, 128) bool

    def pair_swap(v):  # v[..., j] -> v[..., partner(j)]   (x0 <-> x1 within a pair)
        return jnp.where(take_a,
                         pltpu.roll(v, 127, axis=1),
                         pltpu.roll(v, 1, axis=1))

    # Residual trunk: x <- relu((1 + w_self) * x + w_other * partner + b)
    for l in range(n_layers):
        a = p_ref[3 * l + 0: 3 * l + 1, :]
        b = p_ref[3 * l + 1: 3 * l + 2, :]
        c = p_ref[3 * l + 2: 3 * l + 3, :]
        x = jnp.maximum(a * x + b * pair_swap(x) + c, 0.0)

    base = 3 * n_layers
    cs = p_ref[base + 0: base + 1, :]
    co = p_ref[base + 1: base + 2, :]
    cb = p_ref[base + 2: base + 3, :]
    dm = p_ref[base + 3: base + 4, :]   # 0.0 on feature-0 lanes, 1.0 on feature-1 lanes

    # d = z1 - z0 (identical value on both lanes of a pair)
    d = cs * x + co * pair_swap(x) + cb

    # softplus(d) = max(d, 0) + log1p(exp(-|d|)); accurate log1p using only
    # exp/log/div (Kahan):  log1p(t) = t               if 1 + t == 1
    #                                = log(u) * t/(u-1) otherwise, u = 1 + t
    t = jnp.exp(-jnp.abs(d))
    u = 1.0 + t
    log_term = jnp.where(u == 1.0, t, jnp.log(u) * (t / (u - 1.0)))
    sp = jnp.maximum(d, 0.0) + log_term

    # out0 = -softplus(d) on even (feature-0) lanes, out1 = d - softplus(d) on odd.
    o_ref[...] = dm * d - sp


def _pack_params(layer_w, layer_b, out_w, out_b):
    """Per-lane coefficient rows; residual + output-layer algebra folded in."""
    n_layers = layer_w.shape[0]
    even = (jnp.arange(_LANE) % 2) == 0
    rows = []
    for l in range(n_layers):
        rows.append(jnp.where(even, 1.0 + layer_w[l, 0, 0], 1.0 + layer_w[l, 1, 1]))
        rows.append(jnp.where(even, layer_w[l, 0, 1], layer_w[l, 1, 0]))
        rows.append(jnp.where(even, layer_b[l, 0], layer_b[l, 1]))
    rows.append(jnp.where(even, out_w[1, 0] - out_w[0, 0], out_w[1, 1] - out_w[0, 1]))
    rows.append(jnp.where(even, out_w[1, 1] - out_w[0, 1], out_w[1, 0] - out_w[0, 0]))
    rows.append(jnp.full((_LANE,), out_b[1] - out_b[0]))
    rows.append(jnp.where(even, 0.0, 1.0))
    table = jnp.stack(rows).astype(jnp.float32)                   # (3L + 4, 128)
    r_pad = ((table.shape[0] + 7) // 8) * 8
    return jnp.zeros((r_pad, _LANE), jnp.float32).at[: table.shape[0]].set(table)


def sdf_model(x, layer_w, layer_b, out_w, out_b, *, block_rows=2048):
    """x: (N, 2) f32.  layer_w: (L, 2, 2) PyTorch-style (out, in).  out_w: (2, 2)."""
    n = x.shape[0]
    n_layers = layer_w.shape[0]
    params = _pack_params(layer_w, layer_b, out_w, out_b)
    r_pad = params.shape[0]

    # Lane-interleaved layout via free row-major reshapes: (N, 2) -> (rows, 128).
    flat = jnp.asarray(x, jnp.float32).reshape(-1)
    total = flat.shape[0]
    total_pad = pl.cdiv(total, _LANE) * _LANE
    if total_pad != total:                       # only when N % 64 != 0
        flat = jnp.pad(flat, (0, total_pad - total))
    x2d = flat.reshape(total_pad // _LANE, _LANE)
    rows_n = x2d.shape[0]

    # Big tiles (multiple of 8 sublanes) amortize per-step overhead; clamp so that
    # larger inputs always produce >= 2 grid steps (keeps both v7x TCs busy).
    tm = min(block_rows, rows_n)
    if rows_n >= 16:
        half = ((pl.cdiv(rows_n, 2) + 7) // 8) * 8
        tm = min(tm, half)

    out2d = pl.pallas_call(
        functools.partial(_sdf_kernel, n_layers=n_layers),
        out_shape=jax.ShapeDtypeStruct((rows_n, _LANE), jnp.float32),
        grid_spec=pltpu.PrefetchScalarGridSpec(
            num_scalar_prefetch=0,
            grid=(pl.cdiv(rows_n, tm),),
            in_specs=[
                pl.BlockSpec((r_pad, _LANE), lambda i: (0, 0)),   # coeff table (resident)
                pl.BlockSpec((tm, _LANE), lambda i: (i, 0)),      # x tile
            ],
            out_specs=pl.BlockSpec((tm, _LANE), lambda i: (i, 0)),
        ),
        compiler_params=pltpu.CompilerParams(
            dimension_semantics=("parallel",)),
    )(params, x2d)

    out_flat = out2d.reshape(-1)
    if total_pad != total:
        out_flat = out_flat[:total]
    return out_flat.reshape(n, FEAT)


def sdf_model_ref(x, layer_w, layer_b, out_w, out_b):
    """Pure-JAX reference mirroring the PyTorch forward (scalar math, no matmul
    so the TPU's default bf16 matmul precision cannot skew the comparison)."""
    x0, x1 = x[:, 0], x[:, 1]
    for l in range(layer_w.shape[0]):
        y0 = layer_w[l, 0, 0] * x0 + layer_w[l, 0, 1] * x1 + layer_b[l, 0]
        y1 = layer_w[l, 1, 0] * x0 + layer_w[l, 1, 1] * x1 + layer_b[l, 1]
        x0 = jnp.maximum(x0 + y0, 0.0)
        x1 = jnp.maximum(x1 + y1, 0.0)
    z0 = out_w[0, 0] * x0 + out_w[0, 1] * x1 + out_b[0]
    z1 = out_w[1, 0] * x0 + out_w[1, 1] * x1 + out_b[1]
    z = jnp.stack([z0, z1], axis=-1)
    return jax.nn.log_softmax(z, axis=-1)


if __name__ == "__main__":
    key = jax.random.PRNGKey(0)
    k_x, k_w, k_b, k_wo, k_bo, k_x2 = jax.random.split(key, 6)

    n_layers = 3
    layer_w = jax.random.normal(k_w, (n_layers, FEAT, FEAT), dtype=jnp.float32) * 0.5
    layer_b = jax.random.normal(k_b, (n_layers, FEAT), dtype=jnp.float32) * 0.1
    out_w = jax.random.normal(k_wo, (FEAT, FEAT), dtype=jnp.float32) * 0.5
    out_b = jax.random.normal(k_bo, (FEAT,), dtype=jnp.float32) * 0.1

    # Small shape consistent with the module.
    x_small = jax.random.normal(k_x, (16, FEAT), dtype=jnp.float32)
    out_small = jax.block_until_ready(sdf_model(x_small, layer_w, layer_b, out_w, out_b))
    ref_small = sdf_model_ref(x_small, layer_w, layer_b, out_w, out_b)
    assert out_small.shape == (16, FEAT)
    assert jnp.allclose(out_small, ref_small, atol=1e-5, rtol=1e-5)

    # A ragged, multi-tile batch to exercise padding and >1 (parallel) grid step.
    x_big = jax.random.normal(k_x2, (1200, FEAT), dtype=jnp.float32)
    out_big = jax.block_until_ready(sdf_model(x_big, layer_w, layer_b, out_w, out_b))
    ref_big = sdf_model_ref(x_big, layer_w, layer_b, out_w, out_b)
    assert out_big.shape == (1200, FEAT)
    assert jnp.allclose(out_big, ref_big, atol=1e-5, rtol=1e-5)

    print("KERNEL_OK")
</pallas_src>

<mosaic_0001>
module attributes {stable_mosaic.version = 11 : i64} {
  func.func @_sdf_kernel(%arg0: i32, %arg1: memref<16x128xf32, #tpu.memory_space<vmem>>, %arg2: memref<1x128xf32, #tpu.memory_space<vmem>>, %arg3: memref<1x128xf32, #tpu.memory_space<vmem>>) attributes {dimension_semantics = [#tpu.dimension_semantics<parallel>], iteration_bounds = array<i64: 1>, scalar_prefetch = 0 : i64, scratch_operands = 0 : i64, tpu.core_type = #tpu.core_type<tc>, window_params = [{pipeline_mode = #tpu.pipeline_mode<synchronous>, transform_indices = @transform_0, window_bounds = array<i64: 16, 128>}, {transform_indices = @transform_1, window_bounds = array<i64: 1, 128>}, {transform_indices = @transform_2, window_bounds = array<i64: 1, 128>}]} {
    %c0 = arith.constant 0 : index
    %c0_0 = arith.constant 0 : index
    %0 = vector.load %arg2[%c0, %c0_0] : memref<1x128xf32, #tpu.memory_space<vmem>>, vector<1x128xf32>
    %1 = tpu.iota {dimensions = array<i32: 1>} : vector<1x128xi32>
    %c2_i32 = arith.constant 2 : i32
    %c0_i32 = arith.constant 0 : i32
    %2 = arith.cmpi eq, %c2_i32, %c0_i32 : i32
    %c1_i32 = arith.constant 1 : i32
    %3 = arith.select %2, %c1_i32, %c2_i32 : i32
    %4 = vector.broadcast %3 : i32 to vector<1x128xi32>
    %5 = arith.remsi %1, %4 : vector<1x128xi32>
    %c0_i32_1 = arith.constant 0 : i32
    %6 = vector.broadcast %c0_i32_1 : i32 to vector<1x128xi32>
    %7 = arith.cmpi ne, %5, %6 : vector<1x128xi32>
    %c0_i32_2 = arith.constant 0 : i32
    %8 = vector.broadcast %c0_i32_2 : i32 to vector<1x128xi32>
    %9 = arith.cmpi slt, %5, %8 : vector<1x128xi32>
    %c0_i32_3 = arith.constant 0 : i32
    %10 = arith.cmpi slt, %3, %c0_i32_3 : i32
    %11 = vector.broadcast %10 : i1 to vector<1x128xi1>
    %12 = vector.broadcast %11 : vector<1x128xi1> to vector<1x128xi1>
    %13 = arith.xori %9, %12 : vector<1x128xi1>
    %14 = arith.andi %13, %7 : vector<1x128xi1>
    %15 = vector.broadcast %3 : i32 to vector<1x128xi32>
    %16 = arith.addi %5, %15 : vector<1x128xi32>
    %17 = arith.select %14, %16, %5 : vector<1x128xi1>, vector<1x128xi32>
    %c0_i32_4 = arith.constant 0 : i32
    %18 = vector.broadcast %c0_i32_4 : i32 to vector<1x128xi32>
    %19 = arith.cmpi eq, %17, %18 : vector<1x128xi32>
    %c1_i32_5 = arith.constant 1 : i32
    %c-1_i32 = arith.constant -1 : i32
    %20 = vector.broadcast %c1_i32_5 : i32 to vector<1x128xi32>
    %21 = vector.broadcast %c-1_i32 : i32 to vector<1x128xi32>
    %22 = arith.select %19, %20, %21 : vector<1x128xi1>, vector<1x128xi32>
    %23 = arith.addi %1, %22 : vector<1x128xi32>
    %c127_i32 = arith.constant 127 : i32
    %24 = tpu.dynamic_rotate %1 by %c127_i32 dim 1 : vector<1x128xi32>, i32 -> vector<1x128xi32>
    %25 = arith.cmpi eq, %24, %23 : vector<1x128xi32>
    %c0_6 = arith.constant 0 : index
    %c0_7 = arith.constant 0 : index
    %26 = vector.load %arg1[%c0_6, %c0_7] : memref<16x128xf32, #tpu.memory_space<vmem>>, vector<1x128xf32>
    %c1 = arith.constant 1 : index
    %c0_8 = arith.constant 0 : index
    %27 = vector.load %arg1[%c1, %c0_8] : memref<16x128xf32, #tpu.memory_space<vmem>>, vector<1x128xf32>
    %c2 = arith.constant 2 : index
    %c0_9 = arith.constant 0 : index
    %28 = vector.load %arg1[%c2, %c0_9] : memref<16x128xf32, #tpu.memory_space<vmem>>, vector<1x128xf32>
    %29 = arith.mulf %26, %0 : vector<1x128xf32>
    %c127_i32_10 = arith.constant 127 : i32
    %30 = tpu.dynamic_rotate %0 by %c127_i32_10 dim 1 : vector<1x128xf32>, i32 -> vector<1x128xf32>
    %c1_i32_11 = arith.constant 1 : i32
    %31 = tpu.dynamic_rotate %0 by %c1_i32_11 dim 1 : vector<1x128xf32>, i32 -> vector<1x128xf32>
    %32 = arith.select %25, %30, %31 : vector<1x128xi1>, vector<1x128xf32>
    %33 = arith.mulf %27, %32 : vector<1x128xf32>
    %34 = arith.addf %29, %33 : vector<1x128xf32>
    %35 = arith.addf %34, %28 : vector<1x128xf32>
    %cst = arith.constant 0.000000e+00 : f32
    %36 = vector.broadcast %cst : f32 to vector<1x128xf32>
    %37 = arith.maximumf %35, %36 : vector<1x128xf32>
    %c3 = arith.constant 3 : index
    %c0_12 = arith.constant 0 : index
    %38 = vector.load %arg1[%c3, %c0_12] : memref<16x128xf32, #tpu.memory_space<vmem>>, vector<1x128xf32>
    %c4 = arith.constant 4 : index
    %c0_13 = arith.constant 0 : index
    %39 = vector.load %arg1[%c4, %c0_13] : memref<16x128xf32, #tpu.memory_space<vmem>>, vector<1x128xf32>
    %c5 = arith.constant 5 : index
    %c0_14 = arith.constant 0 : index
    %40 = vector.load %arg1[%c5, %c0_14] : memref<16x128xf32, #tpu.memory_space<vmem>>, vector<1x128xf32>
    %41 = arith.mulf %38, %37 : vector<1x128xf32>
    %c127_i32_15 = arith.constant 127 : i32
    %42 = tpu.dynamic_rotate %37 by %c127_i32_15 dim 1 : vector<1x128xf32>, i32 -> vector<1x128xf32>
    %c1_i32_16 = arith.constant 1 : i32
    %43 = tpu.dynamic_rotate %37 by %c1_i32_16 dim 1 : vector<1x128xf32>, i32 -> vector<1x128xf32>
    %44 = arith.select %25, %42, %43 : vector<1x128xi1>, vector<1x128xf32>
    %45 = arith.mulf %39, %44 : vector<1x128xf32>
    %46 = arith.addf %41, %45 : vector<1x128xf32>
    %47 = arith.addf %46, %40 : vector<1x128xf32>
    %cst_17 = arith.constant 0.000000e+00 : f32
    %48 = vector.broadcast %cst_17 : f32 to vector<1x128xf32>
    %49 = arith.maximumf %47, %48 : vector<1x128xf32>
    %c6 = arith.constant 6 : index
    %c0_18 = arith.constant 0 : index
    %50 = vector.load %arg1[%c6, %c0_18] : memref<16x128xf32, #tpu.memory_space<vmem>>, vector<1x128xf32>
    %c7 = arith.constant 7 : index
    %c0_19 = arith.constant 0 : index
    %51 = vector.load %arg1[%c7, %c0_19] : memref<16x128xf32, #tpu.memory_space<vmem>>, vector<1x128xf32>
    %c8 = arith.constant 8 : index
    %c0_20 = arith.constant 0 : index
    %52 = vector.load %arg1[%c8, %c0_20] : memref<16x128xf32, #tpu.memory_space<vmem>>, vector<1x128xf32>
    %53 = arith.mulf %50, %49 : vector<1x128xf32>
    %c127_i32_21 = arith.constant 127 : i32
    %54 = tpu.dynamic_rotate %49 by %c127_i32_21 dim 1 : vector<1x128xf32>, i32 -> vector<1x128xf32>
    %c1_i32_22 = arith.constant 1 : i32
    %55 = tpu.dynamic_rotate %49 by %c1_i32_22 dim 1 : vector<1x128xf32>, i32 -> vector<1x128xf32>
    %56 = arith.select %25, %54, %55 : vector<1x128xi1>, vector<1x128xf32>
    %57 = arith.mulf %51, %56 : vector<1x128xf32>
    %58 = arith.addf %53, %57 : vector<1x128xf32>
    %59 = arith.addf %58, %52 : vector<1x128xf32>
    %cst_23 = arith.constant 0.000000e+00 : f32
    %60 = vector.broadcast %cst_23 : f32 to vector<1x128xf32>
    %61 = arith.maximumf %59, %60 : vector<1x128xf32>
    %c9 = arith.constant 9 : index
    %c0_24 = arith.constant 0 : index
    %62 = vector.load %arg1[%c9, %c0_24] : memref<16x128xf32, #tpu.memory_space<vmem>>, vector<1x128xf32>
    %c10 = arith.constant 10 : index
    %c0_25 = arith.constant 0 : index
    %63 = vector.load %arg1[%c10, %c0_25] : memref<16x128xf32, #tpu.memory_space<vmem>>, vector<1x128xf32>
    %c11 = arith.constant 11 : index
    %c0_26 = arith.constant 0 : index
    %64 = vector.load %arg1[%c11, %c0_26] : memref<16x128xf32, #tpu.memory_space<vmem>>, vector<1x128xf32>
    %c12 = arith.constant 12 : index
    %c0_27 = arith.constant 0 : index
    %65 = vector.load %arg1[%c12, %c0_27] : memref<16x128xf32, #tpu.memory_space<vmem>>, vector<1x128xf32>
    %66 = arith.mulf %62, %61 : vector<1x128xf32>
    %c127_i32_28 = arith.constant 127 : i32
    %67 = tpu.dynamic_rotate %61 by %c127_i32_28 dim 1 : vector<1x128xf32>, i32 -> vector<1x128xf32>
    %c1_i32_29 = arith.constant 1 : i32
    %68 = tpu.dynamic_rotate %61 by %c1_i32_29 dim 1 : vector<1x128xf32>, i32 -> vector<1x128xf32>
    %69 = arith.select %25, %67, %68 : vector<1x128xi1>, vector<1x128xf32>
    %70 = arith.mulf %63, %69 : vector<1x128xf32>
    %71 = arith.addf %66, %70 : vector<1x128xf32>
    %72 = arith.addf %71, %64 : vector<1x128xf32>
    %73 = math.absf %72 : vector<1x128xf32>
    %cst_30 = arith.constant 0.000000e+00 : f32
    %74 = vector.broadcast %cst_30 : f32 to vector<1x128xf32>
    %75 = arith.subf %74, %73 : vector<1x128xf32>
    %76 = math.exp %75 : vector<1x128xf32>
    %cst_31 = arith.constant 1.000000e+00 : f32
    %77 = vector.broadcast %cst_31 : f32 to vector<1x128xf32>
    %78 = arith.addf %77, %76 : vector<1x128xf32>
    %cst_32 = arith.constant 1.000000e+00 : f32
    %79 = vector.broadcast %cst_32 : f32 to vector<1x128xf32>
    %80 = arith.cmpf oeq, %78, %79 : vector<1x128xf32>
    %81 = math.log %78 : vector<1x128xf32>
    %cst_33 = arith.constant 1.000000e+00 : f32
    %82 = vector.broadcast %cst_33 : f32 to vector<1x128xf32>
    %83 = arith.subf %78, %82 : vector<1x128xf32>
    %84 = arith.divf %76, %83 : vector<1x128xf32>
    %85 = arith.mulf %81, %84 : vector<1x128xf32>
    %86 = arith.select %80, %76, %85 : vector<1x128xi1>, vector<1x128xf32>
    %cst_34 = arith.constant 0.000000e+00 : f32
    %87 = vector.broadcast %cst_34 : f32 to vector<1x128xf32>
    %88 = arith.maximumf %72, %87 : vector<1x128xf32>
    %89 = arith.addf %88, %86 : vector<1x128xf32>
    %90 = arith.mulf %65, %72 : vector<1x128xf32>
    %91 = arith.subf %90, %89 : vector<1x128xf32>
    %c0_35 = arith.constant 0 : index
    %c0_36 = arith.constant 0 : index
    %92 = vector.load %arg3[%c0_35, %c0_36] : memref<1x128xf32, #tpu.memory_space<vmem>>, vector<1x128xf32>
    tpu.vector_store %arg3[%c0_35, %c0_36], %91 {strides = array<i32>} : memref<1x128xf32, #tpu.memory_space<vmem>>, vector<1x128xf32>,
    return
  }
  func.func @transform_0(%arg0: i32) -> (i32, i32) {
    %c0_i32 = arith.constant 0 : i32
    %c0_i32_0 = arith.constant 0 : i32
    %c0_i32_1 = arith.constant 0 : i32
    return %c0_i32, %c0_i32_0 : i32, i32
  }
  func.func @transform_1(%arg0: i32) -> (i32, i32) {
    %c0_i32 = arith.constant 0 : i32
    %c0_i32_0 = arith.constant 0 : i32
    return %arg0, %c0_i32 : i32, i32
  }
  func.func @transform_2(%arg0: i32) -> (i32, i32) {
    %c0_i32 = arith.constant 0 : i32
    %c0_i32_0 = arith.constant 0 : i32
    return %arg0, %c0_i32 : i32, i32
  }
}

</mosaic_0001>

<llo_original>
// kernel: tpu_custom_call.1
$region0: #{tpu_custom_call.1}
  #allocation0 [shape = 'u32[]', space=smem, size = 0x4, offset = 0x4, fixed_abs, tag = 'smem constant byte address 0x4 - core index']
  #allocation1 [shape = 'u32[144,128]{1,0:T(1,128)}', space=vmem, size = 0x12000, scoped, tag = 'internal scratch']
  %s0 = inlined_call_operand.hbm [shape: f32[16,128], index: 0, kind: input, shape index: {}]
  %s1 = inlined_call_operand.vmem [shape: f32[1,128], index: 1, kind: input, shape index: {}]
  %s2 = inlined_call_operand.hbm [shape: f32[1,128], index: 2, kind: output, shape index: {}]
  %s3 = sld [smem:[#allocation0]]
  $region22: #{tpu_custom_call.1} parent=0
    _
  %s5 = ssub.s32 1, %s3
  %s6 = scalar_select 0, %s5, %s3
  $region1: #{tpu_custom_call.1} parent=0
    #allocation2 [shape = 'u8[8192]{0}', space=vmem, size = 0x2000, scoped, tag = 'input window, operand 0, single buffered']
    #allocation3 [shape = 's32[1]{0}', space=sflag, size = 0x4, scoped, tag = 'scoped memory for tpu_custom_call.1']
    #allocation4 [shape = 's32[1]{0}', space=sflag, size = 0x4, scoped, tag = 'scoped memory for tpu_custom_call.1']
    #allocation5 [shape = 'u8[512]{0}', space=vmem, size = 0x400, scoped, tag = 'output window, operand 0, single buffered']
    %7 = vsyncpa [#allocation3], 0
    %8 = vsyncpa [#allocation4], 0
    // Predicated region
    $region2: #{tpu_custom_call.1} parent=1 // pred_check
      _
    $region3: #{tpu_custom_call.1} parent=1 // pred_check_branch
      %10 = sbr.rel (0) target = $region5
    $region4: #{tpu_custom_call.1} parent=1 // pred_region
      %s12 = ssub.s32 256, 256
      %13 = vsyncadd [#allocation3], %s12
      %s14 = sshll.u32 [#allocation2], 4
      %s15 = int_to_ptr.vmem [resolvable:$true] %s14
      %20 = dma.hbm_to_vmem [thread:$0]  %s0, 256, %s15, [#allocation3], 128, 128, 8
    $region5: #{tpu_custom_call.1} parent=1 // pred_fallthru
      _
    // Predicated region
    $region6: #{tpu_custom_call.1} parent=1 // pred_check
      _
    $region7: #{tpu_custom_call.1} parent=1 // pred_check_branch
      %22 = sbr.rel (0) target = $region9
    $region8: #{tpu_custom_call.1} parent=1 // pred_region
      _
    $region9: #{tpu_custom_call.1} parent=1 // pred_fallthru
      _
    // Predicated region
    $region10: #{tpu_custom_call.1} parent=1 // pred_check
      _
    $region11: #{tpu_custom_call.1} parent=1 // pred_check_branch
      %24 = sbr.rel (0) target = $region13
    $region12: #{tpu_custom_call.1} parent=1 // pred_region
      %25 = dma.done [#allocation3], 256
    $region13: #{tpu_custom_call.1} parent=1 // pred_fallthru
      _
    %v26 = vld [vmem:[%s1] sm:$0x1]
    %v27 = vlaneseq
    %v28 = vand.u32 %v27, 127
    %vm29 = vcmp.lt.s32.totalorder %v28, 0
    %v30 = vsub.s32 0, %v28
    %v31 = vsel %vm29, %v30, %v28
    %v32 = vshrl.u32 %v31, 1
    %v33 = vand.u32 %v31, 1
    %v34 = vsub.s32 0, %v33
    %v35 = vsel %vm29, %v34, %v33
    %vm36 = vcmp.ne.s32.totalorder %v35, 0
    %vm37 = vcmp.lt.s32.totalorder %v35, 0
    %vm38 = vmand %vm37, %vm36
    %v39 = vadd.s32 %v35, 2
    %v40 = vsel %vm38, %v39, %v35
    %vm41 = vcmp.eq.s32.totalorder %v40, 0
    %v42 = vsel %vm41, 1, 4294967295
    %v43 = vadd.s32 %v28, %v42
    %44 = vrot.lane.b32.xlu0 %v28, 127
    %v45 = vpop.permute.xlu0 %44
    %vm46 = vcmp.eq.s32.totalorder %v45, %v43
    %v47 = vld [vmem:[#allocation2] sm:$0x1]
    %v48 = vld [vmem:[#allocation2 + $0x1] sm:$0x1]
    %v49 = vld [vmem:[#allocation2 + $0x2] sm:$0x1]
    %v50 = vmul.f32 %v47, %v26
    %51 = vrot.lane.b32.xlu0 %v26, 127
    %v52 = vpop.permute.xlu0 %51
    %53 = vrot.lane.b32.xlu0 %v26, 1
    %v54 = vpop.permute.xlu0 %53
    %v55 = vsel %vm46, %v52, %v54
    %v56 = vmul.f32 %v48, %v55
    %v57 = vadd.f32 %v50, %v56
    %v58 = vadd.f32 %v57, %v49
    %v59 = vmax.f32 %v58, 0.0
    %v60 = vld [vmem:[#allocation2 + $0x3] sm:$0x1]
    %v61 = vld [vmem:[#allocation2 + $0x4] sm:$0x1]
    %v62 = vld [vmem:[#allocation2 + $0x5] sm:$0x1]
    %v63 = vmul.f32 %v60, %v59
    %64 = vrot.lane.b32.xlu0 %v59, 127
    %v65 = vpop.permute.xlu0 %64
    %66 = vrot.lane.b32.xlu0 %v59, 1
    %v67 = vpop.permute.xlu0 %66
    %v68 = vsel %vm46, %v65, %v67
    %v69 = vmul.f32 %v61, %v68
    %v70 = vadd.f32 %v63, %v69
    %v71 = vadd.f32 %v70, %v62
    %v72 = vmax.f32 %v71, 0.0
    %v73 = vld [vmem:[#allocation2 + $0x6] sm:$0x1]
    %v74 = vld [vmem:[#allocation2 + $0x7] sm:$0x1]
    %v75 = vld [vmem:[#allocation2 + $0x8] sm:$0x1]
    %v76 = vmul.f32 %v73, %v72
    %77 = vrot.lane.b32.xlu0 %v72, 127
    %v78 = vpop.permute.xlu0 %77
    %79 = vrot.lane.b32.xlu0 %v72, 1
    %v80 = vpop.permute.xlu0 %79
    %v81 = vsel %vm46, %v78, %v80
    %v82 = vmul.f32 %v74, %v81
    %v83 = vadd.f32 %v76, %v82
    %v84 = vadd.f32 %v83, %v75
    %v85 = vmax.f32 %v84, 0.0
    %v86 = vld [vmem:[#allocation2 + $0x9] sm:$0x1]
    %v87 = vld [vmem:[#allocation2 + $0xa] sm:$0x1]
    %v88 = vld [vmem:[#allocation2 + $0xb] sm:$0x1]
    %v89 = vld [vmem:[#allocation2 + $0xc] sm:$0x1]
    %v90 = vmul.f32 %v86, %v85
    %91 = vrot.lane.b32.xlu0 %v85, 127
    %v92 = vpop.permute.xlu0 %91
    %93 = vrot.lane.b32.xlu0 %v85, 1
    %v94 = vpop.permute.xlu0 %93
    %v95 = vsel %vm46, %v92, %v94
    %v96 = vmul.f32 %v87, %v95
    %v97 = vadd.f32 %v90, %v96
    %v98 = vadd.f32 %v97, %v88
    %v99 = vand.u32 2147483647, %v98
    %v100 = vsub.f32 0.0, %v99
    %v101 = vmul.f32 %v100, 1.442695
    %v102 = vpow.pop %v101
    %v103 = vadd.f32 %v102, 1.0
    %vm104 = vcmp.eq.f32.partialorder %v103, 1.0
    %v105 = vlog2.pop %v103
    %v106 = vmul.f32 %v105, 0.6931472
    %v107 = vsub.f32 %v103, 1.0
    %v108 = vrcp.pop %v107
    %v109 = vmul.f32 %v102, %v108
    %v110 = vmul.f32 %v106, %v109
    %v111 = vsel %vm104, %v102, %v110
    %v112 = vmax.f32 %v98, 0.0
    %v113 = vadd.f32 %v112, %v111
    %v114 = vmul.f32 %v89, %v98
    %v115 = vsub.f32 %v114, %v113
    %116 = vst [vmem:[#allocation5] sm:$0x1] %v115
    // Predicated region
    $region14: #{tpu_custom_call.1} parent=1 // pred_check
      _
    $region15: #{tpu_custom_call.1} parent=1 // pred_check_branch
      %118 = sbr.rel (0) target = $region17
    $region16: #{tpu_custom_call.1} parent=1 // pred_region
      %s120 = ssub.s32 16, 16
      %121 = vsyncadd [#allocation4], %s120
      %s123 = sshll.u32 [#allocation5], 4
      %s124 = int_to_ptr.vmem [resolvable:$true] %s123
      %126 = dma.vmem_to_hbm [thread:$0]  %s124, 16, %s2, [#allocation4]
    $region17: #{tpu_custom_call.1} parent=1 // pred_fallthru
      _
    // Predicated region
    $region18: #{tpu_custom_call.1} parent=1 // pred_check
      _
    $region19: #{tpu_custom_call.1} parent=1 // pred_check_branch
      %128 = sbr.rel (0) target = $region21
    $region20: #{tpu_custom_call.1} parent=1 // pred_region
      %129 = dma.done [#allocation4], 16
    $region21: #{tpu_custom_call.1} parent=1 // pred_fallthru
      _
    %130 = vsyncpa [#allocation3], 1
    %131 = vsyncpa [#allocation4], 1

</llo_original>
